<compile_context>
chip_gen: v7x
topology: tpu7x:2x2x1
jax: 0.10.0
libtpu: 0.0.40
codegen_flags: <defaults>
</compile_context>

<pallas_src>
import functools

import jax
import jax.numpy as jnp
from jax.experimental import pallas as pl
from jax.experimental.pallas import tpu as pltpu

EPS = 1e-5  # InstanceNorm2d default eps (affine=False, no running stats)


def _residual_block_kernel(x_ref, w1_ref, b1_ref, w2_ref, b2_ref, o_ref, *, H, W):
    C, HW = x_ref.shape                                     # C = padded channel count
    x = x_ref[...].astype(jnp.float32)                      # (C, H*W)

    lane = jax.lax.broadcasted_iota(jnp.int32, (C, HW), 1)
    col = lane % W
    first_col = col == 0
    last_col = col == W - 1
    first_row = lane < W
    last_row = lane >= (H - 1) * W

    inv_hw = jnp.float32(1.0 / HW)
    mxu_dtype = w1_ref.dtype                                # bf16 by default

    def conv3x3(img, w_r, b_r):
        # img: (C, HW) f32. Reflection-padded 3x3 taps via lane rotations (XLU)
        # plus boundary-row/col selects; taps stay in vregs (no VMEM slab).
        right = pltpu.roll(img, shift=HW - 1, axis=1)       # img[l + 1]
        left = pltpu.roll(img, shift=1, axis=1)             # img[l - 1]
        h_taps = (
            jnp.where(first_col, right, left),              # dx = -1 (reflect j=0)
            img,                                            # dx =  0
            jnp.where(last_col, left, right),               # dx = +1 (reflect j=W-1)
        )
        taps = [None] * 9                                   # index t = ky*3 + kx
        for kx, himg in enumerate(h_taps):
            down = pltpu.roll(himg, shift=HW - W, axis=1)   # himg[l + W]
            up = pltpu.roll(himg, shift=W, axis=1)          # himg[l - W]
            taps[0 * 3 + kx] = jnp.where(first_row, down, up)    # dy = -1 (reflect i=0)
            taps[1 * 3 + kx] = himg                               # dy =  0
            taps[2 * 3 + kx] = jnp.where(last_row, up, down)      # dy = +1 (reflect i=H-1)
        # Single fused K = 9*C contraction on the MXU, fed directly from registers.
        slab = jnp.concatenate(taps, axis=0).astype(mxu_dtype)    # (9*C, HW)
        y = jnp.dot(w_r[...], slab, preferred_element_type=jnp.float32)
        return y + b_r[...]                                 # (C, HW) + (C, 1), f32

    def instance_norm(y):
        # One-pass stats kept strictly in f32 (E[y^2] - E[y]^2).
        s1 = jnp.sum(y, axis=1, keepdims=True)
        s2 = jnp.sum(y * y, axis=1, keepdims=True)
        mean = s1 * inv_hw
        var = s2 * inv_hw - mean * mean
        return (y - mean) * jax.lax.rsqrt(var + EPS)

    h = conv3x3(x, w1_ref, b1_ref)
    h = jnp.maximum(instance_norm(h), 0.0)                  # ReLU
    # TODO(synk): Dropout2d(p=0.2) is identity in eval mode; training-mode dropout not implemented.
    h = conv3x3(h, w2_ref, b2_ref)
    h = instance_norm(h)

    o_ref[...] = (x + h).astype(o_ref.dtype)


def residual_block(x, w1, b1, w2, b2, *, compute_dtype=jnp.bfloat16):
    """x: (N, C, H, W); w*: (C, C, 3, 3); b*: (C,). Returns (N, C, H, W).

    compute_dtype controls the MXU operand dtype only (packed weights + tap
    slab); instance-norm stats, bias add and residual add stay f32.
    """
    N, C, H, W = x.shape
    HW = H * W
    Cp = ((C + 7) // 8) * 8                                 # full-sublane channel count

    # Lane-dense activations: last dim H*W is a multiple of 128; pad channels.
    x3 = x.reshape(N, C, HW)
    if Cp != C:
        x3 = jnp.pad(x3, ((0, 0), (0, Cp - C), (0, 0)))

    def pack_w(w):
        # (C,C,3,3) -> zero-pad to (Cp,Cp,3,3) -> (Cout, 9*Cin); column = tap*Cp + cin,
        # tap = ky*3 + kx. Padded rows/cols are zero, so the dot result is unchanged.
        wp = jnp.pad(w, ((0, Cp - C), (0, Cp - C), (0, 0), (0, 0)))
        return jnp.transpose(wp.reshape(Cp, Cp, 9), (0, 2, 1)) \
                  .reshape(Cp, 9 * Cp).astype(compute_dtype)

    def pack_b(b):
        return jnp.pad(b, (0, Cp - C)).reshape(Cp, 1).astype(jnp.float32)

    w1_p, w2_p = pack_w(w1), pack_w(w2)
    b1_c, b2_c = pack_b(b1), pack_b(b2)

    # Dtype-aware scoped-VMEM budget with headroom (no clamp to full physical VMEM).
    xb = jnp.dtype(x.dtype).itemsize
    cb = jnp.dtype(compute_dtype).itemsize
    block_io = 2 * 2 * Cp * HW * xb                         # double-buffered in + out blocks
    weights = 2 * 2 * 9 * Cp * Cp * cb + 2 * 2 * Cp * 4     # double-buffered w1/w2 + b1/b2
    live = 9 * Cp * HW * cb + 12 * Cp * HW * 4              # tap slab + live f32 temporaries
    est_bytes = block_io + weights + live
    vmem_limit = int(min(max(int(1.5 * est_bytes), 4 << 20), 48 << 20))

    # Advisory cost estimate for XLA scheduling around the custom call.
    cost = pl.CostEstimate(
        flops=2 * N * (2 * Cp * (9 * Cp) * HW),             # two (Cp,9Cp)x(9Cp,HW) matmuls/sample
        transcendentals=2 * N * Cp,                         # rsqrt per channel per instance norm
        bytes_accessed=(x3.size + N * Cp * HW) * xb
        + (w1_p.size + w2_p.size) * cb + (b1_c.size + b2_c.size) * 4,
    )

    kernel = functools.partial(_residual_block_kernel, H=H, W=W)

    out = pl.pallas_call(
        kernel,
        out_shape=jax.ShapeDtypeStruct((N, Cp, HW), x.dtype),
        grid_spec=pltpu.PrefetchScalarGridSpec(
            num_scalar_prefetch=0,
            grid=(N,),
            in_specs=[
                pl.BlockSpec((None, Cp, HW), lambda n: (n, 0, 0)),   # x (squeezed N)
                pl.BlockSpec((Cp, 9 * Cp), lambda n: (0, 0)),        # w1 packed
                pl.BlockSpec((Cp, 1), lambda n: (0, 0)),             # b1
                pl.BlockSpec((Cp, 9 * Cp), lambda n: (0, 0)),        # w2 packed
                pl.BlockSpec((Cp, 1), lambda n: (0, 0)),             # b2
            ],
            out_specs=pl.BlockSpec((None, Cp, HW), lambda n: (n, 0, 0)),
        ),
        compiler_params=pltpu.CompilerParams(
            dimension_semantics=("parallel",),
            vmem_limit_bytes=vmem_limit,
        ),
        cost_estimate=cost,
    )(x3, w1_p, b1_c, w2_p, b2_c)

    # TODO(synk): for realistic ReconResNet sizes (C>=64, H=W>=256) add a parallel
    # HW-tile grid axis with a 1-row halo and a two-pass (stats, normalize)
    # instance norm so blocks fit v7x's 64 MiB VMEM and both TensorCores get work.
    return out[:, :C, :].reshape(N, C, H, W)


def _ref_forward(x, w1, b1, w2, b2):
    # Pure-JAX reference for correctness checking.
    def conv(h, w, b):
        hp = jnp.pad(h, ((0, 0), (0, 0), (1, 1), (1, 1)), mode="reflect")
        y = jax.lax.conv_general_dilated(
            hp, w, (1, 1), "VALID", dimension_numbers=("NCHW", "OIHW", "NCHW"))
        return y + b[None, :, None, None]

    def inorm(h):
        m = jnp.mean(h, axis=(2, 3), keepdims=True)
        v = jnp.mean((h - m) ** 2, axis=(2, 3), keepdims=True)
        return (h - m) / jnp.sqrt(v + EPS)

    h = jnp.maximum(inorm(conv(x, w1, b1)), 0.0)
    h = inorm(conv(h, w2, b2))
    return x + h


if __name__ == "__main__":
    N, C, H, W = 2, 4, 16, 16

    key = jax.random.PRNGKey(0)
    kx, kw1, kb1, kw2, kb2 = jax.random.split(key, 5)

    x = jax.random.normal(kx, (N, C, H, W), dtype=jnp.float32)
    # Deterministic synthetic parameters (shapes from nn.Conv2d(C, C, 3)).
    w1 = 0.1 * jax.random.normal(kw1, (C, C, 3, 3), dtype=jnp.float32)
    b1 = 0.1 * jax.random.normal(kb1, (C,), dtype=jnp.float32)
    w2 = 0.1 * jax.random.normal(kw2, (C, C, 3, 3), dtype=jnp.float32)
    b2 = 0.1 * jax.random.normal(kb2, (C,), dtype=jnp.float32)

    ref = jax.block_until_ready(_ref_forward(x, w1, b1, w2, b2))

    # f32 MXU operands: tight tolerance (validates the algorithm exactly).
    out_f32 = jax.block_until_ready(
        residual_block(x, w1, b1, w2, b2, compute_dtype=jnp.float32))
    assert out_f32.shape == (N, C, H, W)
    assert jnp.allclose(out_f32, ref, atol=2e-4, rtol=2e-4), "f32 mismatch vs JAX reference"

    # bf16 MXU operands (performance default): loose tolerance for bf16 rounding.
    out_bf16 = jax.block_until_ready(residual_block(x, w1, b1, w2, b2))
    assert out_bf16.shape == (N, C, H, W)
    assert jnp.allclose(out_bf16, ref, atol=1.5e-1, rtol=5e-2), "bf16 mismatch vs JAX reference"

    print("KERNEL_OK")
</pallas_src>

<mosaic_0001>
module attributes {stable_mosaic.version = 11 : i64} {
  func.func @_residual_block_kernel(%arg0: i32, %arg1: memref<1x8x256xf32, #tpu.memory_space<vmem>>, %arg2: memref<8x72xf32, #tpu.memory_space<vmem>>, %arg3: memref<8x1xf32, #tpu.memory_space<vmem>>, %arg4: memref<8x72xf32, #tpu.memory_space<vmem>>, %arg5: memref<8x1xf32, #tpu.memory_space<vmem>>, %arg6: memref<1x8x256xf32, #tpu.memory_space<vmem>>) attributes {dimension_semantics = [#tpu.dimension_semantics<parallel>], iteration_bounds = array<i64: 2>, scalar_prefetch = 0 : i64, scratch_operands = 0 : i64, tpu.core_type = #tpu.core_type<tc>, window_params = [{transform_indices = @transform_0, window_bounds = array<i64: 1, 8, 256>}, {pipeline_mode = #tpu.pipeline_mode<synchronous>, transform_indices = @transform_1, window_bounds = array<i64: 8, 72>}, {pipeline_mode = #tpu.pipeline_mode<synchronous>, transform_indices = @transform_2, window_bounds = array<i64: 8, 1>}, {pipeline_mode = #tpu.pipeline_mode<synchronous>, transform_indices = @transform_3, window_bounds = array<i64: 8, 72>}, {pipeline_mode = #tpu.pipeline_mode<synchronous>, transform_indices = @transform_4, window_bounds = array<i64: 8, 1>}, {transform_indices = @transform_5, window_bounds = array<i64: 1, 8, 256>}]} {
    %c0 = arith.constant 0 : index
    %c0_0 = arith.constant 0 : index
    %c0_1 = arith.constant 0 : index
    %0 = vector.load %arg1[%c0, %c0_0, %c0_1] : memref<1x8x256xf32, #tpu.memory_space<vmem>>, vector<1x8x256xf32>
    %1 = vector.shape_cast %0 : vector<1x8x256xf32> to vector<8x256xf32>
    %2 = tpu.iota {dimensions = array<i32: 1>} : vector<8x256xi32>
    %c16_i32 = arith.constant 16 : i32
    %c0_i32 = arith.constant 0 : i32
    %3 = arith.cmpi eq, %c16_i32, %c0_i32 : i32
    %c1_i32 = arith.constant 1 : i32
    %4 = arith.select %3, %c1_i32, %c16_i32 : i32
    %5 = vector.broadcast %4 : i32 to vector<8x256xi32>
    %6 = arith.remsi %2, %5 : vector<8x256xi32>
    %c0_i32_2 = arith.constant 0 : i32
    %7 = vector.broadcast %c0_i32_2 : i32 to vector<8x256xi32>
    %8 = arith.cmpi ne, %6, %7 : vector<8x256xi32>
    %c0_i32_3 = arith.constant 0 : i32
    %9 = vector.broadcast %c0_i32_3 : i32 to vector<8x256xi32>
    %10 = arith.cmpi slt, %6, %9 : vector<8x256xi32>
    %c0_i32_4 = arith.constant 0 : i32
    %11 = arith.cmpi slt, %4, %c0_i32_4 : i32
    %12 = vector.broadcast %11 : i1 to vector<8x256xi1>
    %13 = vector.broadcast %12 : vector<8x256xi1> to vector<8x256xi1>
    %14 = arith.xori %10, %13 : vector<8x256xi1>
    %15 = arith.andi %14, %8 : vector<8x256xi1>
    %16 = vector.broadcast %4 : i32 to vector<8x256xi32>
    %17 = arith.addi %6, %16 : vector<8x256xi32>
    %18 = arith.select %15, %17, %6 : vector<8x256xi1>, vector<8x256xi32>
    %c0_i32_5 = arith.constant 0 : i32
    %19 = vector.broadcast %c0_i32_5 : i32 to vector<8x256xi32>
    %20 = arith.cmpi eq, %18, %19 : vector<8x256xi32>
    %c15_i32 = arith.constant 15 : i32
    %21 = vector.broadcast %c15_i32 : i32 to vector<8x256xi32>
    %22 = arith.cmpi eq, %18, %21 : vector<8x256xi32>
    %c16_i32_6 = arith.constant 16 : i32
    %23 = vector.broadcast %c16_i32_6 : i32 to vector<8x256xi32>
    %24 = arith.cmpi slt, %2, %23 : vector<8x256xi32>
    %c240_i32 = arith.constant 240 : i32
    %25 = vector.broadcast %c240_i32 : i32 to vector<8x256xi32>
    %26 = arith.cmpi sge, %2, %25 : vector<8x256xi32>
    %c255_i32 = arith.constant 255 : i32
    %27 = tpu.dynamic_rotate %1 by %c255_i32 dim 1 : vector<8x256xf32>, i32 -> vector<8x256xf32>
    %c1_i32_7 = arith.constant 1 : i32
    %28 = tpu.dynamic_rotate %1 by %c1_i32_7 dim 1 : vector<8x256xf32>, i32 -> vector<8x256xf32>
    %29 = arith.select %20, %27, %28 : vector<8x256xi1>, vector<8x256xf32>
    %30 = arith.select %22, %28, %27 : vector<8x256xi1>, vector<8x256xf32>
    %c240_i32_8 = arith.constant 240 : i32
    %31 = tpu.dynamic_rotate %29 by %c240_i32_8 dim 1 : vector<8x256xf32>, i32 -> vector<8x256xf32>
    %c16_i32_9 = arith.constant 16 : i32
    %32 = tpu.dynamic_rotate %29 by %c16_i32_9 dim 1 : vector<8x256xf32>, i32 -> vector<8x256xf32>
    %33 = arith.select %24, %31, %32 : vector<8x256xi1>, vector<8x256xf32>
    %34 = arith.select %26, %32, %31 : vector<8x256xi1>, vector<8x256xf32>
    %c240_i32_10 = arith.constant 240 : i32
    %35 = tpu.dynamic_rotate %1 by %c240_i32_10 dim 1 : vector<8x256xf32>, i32 -> vector<8x256xf32>
    %c16_i32_11 = arith.constant 16 : i32
    %36 = tpu.dynamic_rotate %1 by %c16_i32_11 dim 1 : vector<8x256xf32>, i32 -> vector<8x256xf32>
    %37 = arith.select %24, %35, %36 : vector<8x256xi1>, vector<8x256xf32>
    %38 = arith.select %26, %36, %35 : vector<8x256xi1>, vector<8x256xf32>
    %c240_i32_12 = arith.constant 240 : i32
    %39 = tpu.dynamic_rotate %30 by %c240_i32_12 dim 1 : vector<8x256xf32>, i32 -> vector<8x256xf32>
    %c16_i32_13 = arith.constant 16 : i32
    %40 = tpu.dynamic_rotate %30 by %c16_i32_13 dim 1 : vector<8x256xf32>, i32 -> vector<8x256xf32>
    %41 = arith.select %24, %39, %40 : vector<8x256xi1>, vector<8x256xf32>
    %42 = arith.select %26, %40, %39 : vector<8x256xi1>, vector<8x256xf32>
    %43 = tpu.concatenate %33, %37, %41, %29, %1, %30, %34, %38, %42 in 0 : vector<8x256xf32>, vector<8x256xf32>, vector<8x256xf32>, vector<8x256xf32>, vector<8x256xf32>, vector<8x256xf32>, vector<8x256xf32>, vector<8x256xf32>, vector<8x256xf32> -> vector<72x256xf32>
    %c0_14 = arith.constant 0 : index
    %c0_15 = arith.constant 0 : index
    %44 = vector.load %arg2[%c0_14, %c0_15] : memref<8x72xf32, #tpu.memory_space<vmem>>, vector<8x72xf32>
    %cst = arith.constant dense<0.000000e+00> : vector<8x256xf32>
    %45 = tpu.matmul %44, %43, %cst {dimension_numbers = #tpu.dot_dimension_numbers<[1], [0], [0], [1], [0, 0, 1, 1], [], []>} : vector<8x72xf32>, vector<72x256xf32>, vector<8x256xf32> -> vector<8x256xf32>
    %c0_16 = arith.constant 0 : index
    %c0_17 = arith.constant 0 : index
    %46 = vector.load %arg3[%c0_16, %c0_17] : memref<8x1xf32, #tpu.memory_space<vmem>>, vector<8x1xf32>
    %47 = vector.broadcast %46 : vector<8x1xf32> to vector<8x256xf32>
    %48 = arith.addf %45, %47 : vector<8x256xf32>
    %cst_18 = arith.constant dense<0.000000e+00> : vector<8xf32>
    %49 = vector.multi_reduction <add>, %48, %cst_18 [1] : vector<8x256xf32> to vector<8xf32>
    %50 = vector.shape_cast %49 : vector<8xf32> to vector<8x1xf32>
    %51 = arith.mulf %48, %48 : vector<8x256xf32>
    %cst_19 = arith.constant dense<0.000000e+00> : vector<8xf32>
    %52 = vector.multi_reduction <add>, %51, %cst_19 [1] : vector<8x256xf32> to vector<8xf32>
    %53 = vector.shape_cast %52 : vector<8xf32> to vector<8x1xf32>
    %cst_20 = arith.constant 3.906250e-03 : f32
    %54 = vector.broadcast %cst_20 : f32 to vector<8x1xf32>
    %55 = arith.mulf %50, %54 : vector<8x1xf32>
    %cst_21 = arith.constant 3.906250e-03 : f32
    %56 = vector.broadcast %cst_21 : f32 to vector<8x1xf32>
    %57 = arith.mulf %53, %56 : vector<8x1xf32>
    %58 = arith.mulf %55, %55 : vector<8x1xf32>
    %59 = arith.subf %57, %58 : vector<8x1xf32>
    %60 = vector.broadcast %55 : vector<8x1xf32> to vector<8x256xf32>
    %61 = arith.subf %48, %60 : vector<8x256xf32>
    %cst_22 = arith.constant 9.99999974E-6 : f32
    %62 = vector.broadcast %cst_22 : f32 to vector<8x1xf32>
    %63 = arith.addf %59, %62 : vector<8x1xf32>
    %64 = math.rsqrt %63 : vector<8x1xf32>
    %65 = vector.broadcast %64 : vector<8x1xf32> to vector<8x256xf32>
    %66 = arith.mulf %61, %65 : vector<8x256xf32>
    %cst_23 = arith.constant 0.000000e+00 : f32
    %67 = vector.broadcast %cst_23 : f32 to vector<8x256xf32>
    %68 = arith.maximumf %66, %67 : vector<8x256xf32>
    %c255_i32_24 = arith.constant 255 : i32
    %69 = tpu.dynamic_rotate %68 by %c255_i32_24 dim 1 : vector<8x256xf32>, i32 -> vector<8x256xf32>
    %c1_i32_25 = arith.constant 1 : i32
    %70 = tpu.dynamic_rotate %68 by %c1_i32_25 dim 1 : vector<8x256xf32>, i32 -> vector<8x256xf32>
    %71 = arith.select %20, %69, %70 : vector<8x256xi1>, vector<8x256xf32>
    %72 = arith.select %22, %70, %69 : vector<8x256xi1>, vector<8x256xf32>
    %c240_i32_26 = arith.constant 240 : i32
    %73 = tpu.dynamic_rotate %71 by %c240_i32_26 dim 1 : vector<8x256xf32>, i32 -> vector<8x256xf32>
    %c16_i32_27 = arith.constant 16 : i32
    %74 = tpu.dynamic_rotate %71 by %c16_i32_27 dim 1 : vector<8x256xf32>, i32 -> vector<8x256xf32>
    %75 = arith.select %24, %73, %74 : vector<8x256xi1>, vector<8x256xf32>
    %76 = arith.select %26, %74, %73 : vector<8x256xi1>, vector<8x256xf32>
    %c240_i32_28 = arith.constant 240 : i32
    %77 = tpu.dynamic_rotate %68 by %c240_i32_28 dim 1 : vector<8x256xf32>, i32 -> vector<8x256xf32>
    %c16_i32_29 = arith.constant 16 : i32
    %78 = tpu.dynamic_rotate %68 by %c16_i32_29 dim 1 : vector<8x256xf32>, i32 -> vector<8x256xf32>
    %79 = arith.select %24, %77, %78 : vector<8x256xi1>, vector<8x256xf32>
    %80 = arith.select %26, %78, %77 : vector<8x256xi1>, vector<8x256xf32>
    %c240_i32_30 = arith.constant 240 : i32
    %81 = tpu.dynamic_rotate %72 by %c240_i32_30 dim 1 : vector<8x256xf32>, i32 -> vector<8x256xf32>
    %c16_i32_31 = arith.constant 16 : i32
    %82 = tpu.dynamic_rotate %72 by %c16_i32_31 dim 1 : vector<8x256xf32>, i32 -> vector<8x256xf32>
    %83 = arith.select %24, %81, %82 : vector<8x256xi1>, vector<8x256xf32>
    %84 = arith.select %26, %82, %81 : vector<8x256xi1>, vector<8x256xf32>
    %85 = tpu.concatenate %75, %79, %83, %71, %68, %72, %76, %80, %84 in 0 : vector<8x256xf32>, vector<8x256xf32>, vector<8x256xf32>, vector<8x256xf32>, vector<8x256xf32>, vector<8x256xf32>, vector<8x256xf32>, vector<8x256xf32>, vector<8x256xf32> -> vector<72x256xf32>
    %c0_32 = arith.constant 0 : index
    %c0_33 = arith.constant 0 : index
    %86 = vector.load %arg4[%c0_32, %c0_33] : memref<8x72xf32, #tpu.memory_space<vmem>>, vector<8x72xf32>
    %cst_34 = arith.constant dense<0.000000e+00> : vector<8x256xf32>
    %87 = tpu.matmul %86, %85, %cst_34 {dimension_numbers = #tpu.dot_dimension_numbers<[1], [0], [0], [1], [0, 0, 1, 1], [], []>} : vector<8x72xf32>, vector<72x256xf32>, vector<8x256xf32> -> vector<8x256xf32>
    %c0_35 = arith.constant 0 : index
    %c0_36 = arith.constant 0 : index
    %88 = vector.load %arg5[%c0_35, %c0_36] : memref<8x1xf32, #tpu.memory_space<vmem>>, vector<8x1xf32>
    %89 = vector.broadcast %88 : vector<8x1xf32> to vector<8x256xf32>
    %90 = arith.addf %87, %89 : vector<8x256xf32>
    %cst_37 = arith.constant dense<0.000000e+00> : vector<8xf32>
    %91 = vector.multi_reduction <add>, %90, %cst_37 [1] : vector<8x256xf32> to vector<8xf32>
    %92 = vector.shape_cast %91 : vector<8xf32> to vector<8x1xf32>
    %93 = arith.mulf %90, %90 : vector<8x256xf32>
    %cst_38 = arith.constant dense<0.000000e+00> : vector<8xf32>
    %94 = vector.multi_reduction <add>, %93, %cst_38 [1] : vector<8x256xf32> to vector<8xf32>
    %95 = vector.shape_cast %94 : vector<8xf32> to vector<8x1xf32>
    %cst_39 = arith.constant 3.906250e-03 : f32
    %96 = vector.broadcast %cst_39 : f32 to vector<8x1xf32>
    %97 = arith.mulf %92, %96 : vector<8x1xf32>
    %cst_40 = arith.constant 3.906250e-03 : f32
    %98 = vector.broadcast %cst_40 : f32 to vector<8x1xf32>
    %99 = arith.mulf %95, %98 : vector<8x1xf32>
    %100 = arith.mulf %97, %97 : vector<8x1xf32>
    %101 = arith.subf %99, %100 : vector<8x1xf32>
    %102 = vector.broadcast %97 : vector<8x1xf32> to vector<8x256xf32>
    %103 = arith.subf %90, %102 : vector<8x256xf32>
    %cst_41 = arith.constant 9.99999974E-6 : f32
    %104 = vector.broadcast %cst_41 : f32 to vector<8x1xf32>
    %105 = arith.addf %101, %104 : vector<8x1xf32>
    %106 = math.rsqrt %105 : vector<8x1xf32>
    %107 = vector.broadcast %106 : vector<8x1xf32> to vector<8x256xf32>
    %108 = arith.mulf %103, %107 : vector<8x256xf32>
    %109 = arith.addf %1, %108 : vector<8x256xf32>
    %c0_42 = arith.constant 0 : index
    %c0_43 = arith.constant 0 : index
    %c0_44 = arith.constant 0 : index
    %110 = vector.load %arg6[%c0_42, %c0_43, %c0_44] : memref<1x8x256xf32, #tpu.memory_space<vmem>>, vector<1x8x256xf32>
    %111 = vector.shape_cast %110 : vector<1x8x256xf32> to vector<8x256xf32>
    %112 = vector.shape_cast %109 : vector<8x256xf32> to vector<1x8x256xf32>
    tpu.vector_store %arg6[%c0_42, %c0_43, %c0_44], %112 {strides = array<i32>} : memref<1x8x256xf32, #tpu.memory_space<vmem>>, vector<1x8x256xf32>,
    return
  }
  func.func @transform_0(%arg0: i32) -> (i32, i32, i32) {
    %c0_i32 = arith.constant 0 : i32
    %c0_i32_0 = arith.constant 0 : i32
    %c0_i32_1 = arith.constant 0 : i32
    return %arg0, %c0_i32, %c0_i32_0 : i32, i32, i32
  }
  func.func @transform_1(%arg0: i32) -> (i32, i32) {
    %c0_i32 = arith.constant 0 : i32
    %c0_i32_0 = arith.constant 0 : i32
    %c0_i32_1 = arith.constant 0 : i32
    return %c0_i32, %c0_i32_0 : i32, i32
  }
  func.func @transform_2(%arg0: i32) -> (i32, i32) {
    %c0_i32 = arith.constant 0 : i32
    %c0_i32_0 = arith.constant 0 : i32
    %c0_i32_1 = arith.constant 0 : i32
    return %c0_i32, %c0_i32_0 : i32, i32
  }
  func.func @transform_3(%arg0: i32) -> (i32, i32) {
    %c0_i32 = arith.constant 0 : i32
    %c0_i32_0 = arith.constant 0 : i32
    %c0_i32_1 = arith.constant 0 : i32
    return %c0_i32, %c0_i32_0 : i32, i32
  }
  func.func @transform_4(%arg0: i32) -> (i32, i32) {
    %c0_i32 = arith.constant 0 : i32
    %c0_i32_0 = arith.constant 0 : i32
    %c0_i32_1 = arith.constant 0 : i32
    return %c0_i32, %c0_i32_0 : i32, i32
  }
  func.func @transform_5(%arg0: i32) -> (i32, i32, i32) {
    %c0_i32 = arith.constant 0 : i32
    %c0_i32_0 = arith.constant 0 : i32
    %c0_i32_1 = arith.constant 0 : i32
    return %arg0, %c0_i32, %c0_i32_0 : i32, i32, i32
  }
}

</mosaic_0001>

<llo_original>
// kernel: tpu_custom_call.1
$region0: #{tpu_custom_call.1}
  #allocation0 [shape = 'u32[]', space=smem, size = 0x4, offset = 0x4, fixed_abs, tag = 'smem constant byte address 0x4 - core index']
  #allocation1 [shape = 'u32[144,128]{1,0:T(1,128)}', space=vmem, size = 0x12000, scoped, tag = 'internal scratch']
  %s0 = inlined_call_operand.hbm [shape: f32[2,8,256], index: 0, kind: input, shape index: {}]
  %s1 = inlined_call_operand.vmem [shape: f32[8,72], index: 1, kind: input, shape index: {}]
  %s2 = inlined_call_operand.vmem [shape: f32[8,1], index: 2, kind: input, shape index: {}]
  %s3 = inlined_call_operand.vmem [shape: f32[8,72], index: 3, kind: input, shape index: {}]
  %s4 = inlined_call_operand.vmem [shape: f32[8,1], index: 4, kind: input, shape index: {}]
  %s5 = inlined_call_operand.hbm [shape: f32[2,8,256], index: 5, kind: output, shape index: {}]
  %s6 = sld [smem:[#allocation0]]
  $region57: #{tpu_custom_call.1} parent=0
    _
  %s8 = ssub.s32 1, %s6
  %s9 = scalar_select 0, %s8, %s6
  $region1: #{tpu_custom_call.1} parent=0
    #allocation2 [shape = 'u8[16384]{0}', space=vmem, size = 0x4000, scoped, tag = 'input window, operand 0']
    #allocation3 [shape = 's32[2]{0}', space=sflag, size = 0x8, scoped, tag = 'scoped memory for tpu_custom_call.1']
    #allocation4 [shape = 's32[2]{0}', space=sflag, size = 0x8, scoped, tag = 'scoped memory for tpu_custom_call.1']
    #allocation5 [shape = 'u8[16384]{0}', space=vmem, size = 0x4000, scoped, tag = 'output window, operand 0']
    %10 = vsyncpa [#allocation3], 0
    %s11 = scalar_lea.sflag [#allocation3], 1
    %12 = vsyncpa %s11, 0
    %13 = vsyncpa [#allocation4], 0
    %s14 = scalar_lea.sflag [#allocation4], 1
    %15 = vsyncpa %s14, 0
    loop: start=0, step=1, limit=4
    $region2: #{tpu_custom_call.1} parent=1 // loop_pre_header
      _
    $region3: #{tpu_custom_call.1} parent=1 // loop_header
      %s17 = sphi 0, %s21
      %p18 = scmp.ge.s32.totalorder %s17, 4
      %s27 = sphi 0, %s29
      %s30 = sphi 0, %s27
      %s31 = sphi 0, %s30
      %s47 = sphi 0, %s31
      %s51 = sphi 0, %s51
      %s53 = sphi 0, %s51
      %s54 = sphi 0, %s53
      %s68 = sphi 0, %s54
      %s72 = sphi 0, %s72
      %s74 = sphi 0, %s72
      %s75 = sphi 0, %s74
      %s89 = sphi 0, %s75
      %s93 = sphi 0, %s93
      %s95 = sphi 0, %s93
      %s96 = sphi 0, %s95
      %s110 = sphi 0, %s96
      %s114 = sphi 0, %s114
      %s116 = sphi 0, %s114
      %s117 = sphi 0, %s116
      %s131 = sphi 0, %s117
      %s137 = sphi 0, %s139
      %s140 = sphi 0, %s137
      %s141 = sphi 0, %s140
      %s157 = sphi 0, %s141
    $region4: #{tpu_custom_call.1} parent=1 // loop_header_branch
      %20 = sbr.rel (%p18) target = $region8
    $region5: #{tpu_custom_call.1} parent=1 // loop_body
      %s22 = ssub.s32 %s17, 1
      %s23 = ssub.s32 %s17, 2
      %s24 = sadd.s32 %s17, 1
      %s25 = ssub.s32 %s17, %s24
      %p26 = scmp.eq.s32.totalorder %s25, 0
      %s28 = sadd.s32 %s27, 1
      %s29 = scalar_select %p26, %s27, %s28
      %p32 = pneg %p26
      %p33 = scmp.eq.s32.totalorder %s17, 1
      %p34 = por %p32, %p33
      %p35 = scmp.ne.s32.totalorder %s27, %s30
      %p36 = scmp.eq.s32.totalorder %s17, 0
      %p37 = por %p35, %p36
      %p38 = scmp.ne.s32.totalorder %s27, %s30
      %p39 = scmp.eq.s32.totalorder %s22, 1
      %p40 = por %p38, %p39
      %p41 = scmp.ne.s32.totalorder %s30, %s31
      %p42 = scmp.eq.s32.totalorder %s22, 0
      %p43 = por %p41, %p42
      %p44 = scmp.ne.s32.totalorder %s30, %s31
      %p45 = scmp.eq.s32.totalorder %s23, 1
      %p46 = por %p44, %p45
      %p48 = scmp.ne.s32.totalorder %s31, %s47
      %p49 = scmp.eq.s32.totalorder %s23, 0
      %p50 = por %p48, %p49
      %s52 = sadd.s32 %s51, 1
      %p55 = scmp.eq.s32.totalorder %s17, 1
      %p56 = scmp.ne.s32.totalorder %s51, %s53
      %p57 = scmp.eq.s32.totalorder %s17, 0
      %p58 = por %p56, %p57
      %p59 = scmp.ne.s32.totalorder %s51, %s53
      %p60 = scmp.eq.s32.totalorder %s22, 1
      %p61 = por %p59, %p60
      %p62 = scmp.ne.s32.totalorder %s53, %s54
      %p63 = scmp.eq.s32.totalorder %s22, 0
      %p64 = por %p62, %p63
      %p65 = scmp.ne.s32.totalorder %s53, %s54
      %p66 = scmp.eq.s32.totalorder %s23, 1
      %p67 = por %p65, %p66
      %p69 = scmp.ne.s32.totalorder %s54, %s68
      %p70 = scmp.eq.s32.totalorder %s23, 0
      %p71 = por %p69, %p70
      %s73 = sadd.s32 %s72, 1
      %p76 = scmp.eq.s32.totalorder %s17, 1
      %p77 = scmp.ne.s32.totalorder %s72, %s74
      %p78 = scmp.eq.s32.totalorder %s17, 0
      %p79 = por %p77, %p78
      %p80 = scmp.ne.s32.totalorder %s72, %s74
      %p81 = scmp.eq.s32.totalorder %s22, 1
      %p82 = por %p80, %p81
      %p83 = scmp.ne.s32.totalorder %s74, %s75
      %p84 = scmp.eq.s32.totalorder %s22, 0
      %p85 = por %p83, %p84
      %p86 = scmp.ne.s32.totalorder %s74, %s75
      %p87 = scmp.eq.s32.totalorder %s23, 1
      %p88 = por %p86, %p87
      %p90 = scmp.ne.s32.totalorder %s75, %s89
      %p91 = scmp.eq.s32.totalorder %s23, 0
      %p92 = por %p90, %p91
      %s94 = sadd.s32 %s93, 1
      %p97 = scmp.eq.s32.totalorder %s17, 1
      %p98 = scmp.ne.s32.totalorder %s93, %s95
      %p99 = scmp.eq.s32.totalorder %s17, 0
      %p100 = por %p98, %p99
      %p101 = scmp.ne.s32.totalorder %s93, %s95
      %p102 = scmp.eq.s32.totalorder %s22, 1
      %p103 = por %p101, %p102
      %p104 = scmp.ne.s32.totalorder %s95, %s96
      %p105 = scmp.eq.s32.totalorder %s22, 0
      %p106 = por %p104, %p105
      %p107 = scmp.ne.s32.totalorder %s95, %s96
      %p108 = scmp.eq.s32.totalorder %s23, 1
      %p109 = por %p107, %p108
      %p111 = scmp.ne.s32.totalorder %s96, %s110
      %p112 = scmp.eq.s32.totalorder %s23, 0
      %p113 = por %p111, %p112
      %s115 = sadd.s32 %s114, 1
      %p118 = scmp.eq.s32.totalorder %s17, 1
      %p119 = scmp.ne.s32.totalorder %s114, %s116
      %p120 = scmp.eq.s32.totalorder %s17, 0
      %p121 = por %p119, %p120
      %p122 = scmp.ne.s32.totalorder %s114, %s116
      %p123 = scmp.eq.s32.totalorder %s22, 1
      %p124 = por %p122, %p123
      %p125 = scmp.ne.s32.totalorder %s116, %s117
      %p126 = scmp.eq.s32.totalorder %s22, 0
      %p127 = por %p125, %p126
      %p128 = scmp.ne.s32.totalorder %s116, %s117
      %p129 = scmp.eq.s32.totalorder %s23, 1
      %p130 = por %p128, %p129
      %p132 = scmp.ne.s32.totalorder %s117, %s131
      %p133 = scmp.eq.s32.totalorder %s23, 0
      %p134 = por %p132, %p133
      %s135 = ssub.s32 %s17, %s24
      %p136 = scmp.eq.s32.totalorder %s135, 0
      %s138 = sadd.s32 %s137, 1
      %s139 = scalar_select %p136, %s137, %s138
      %p142 = pneg %p136
      %p143 = scmp.eq.s32.totalorder %s17, 1
      %p144 = por %p142, %p143
      %p145 = scmp.ne.s32.totalorder %s137, %s140
      %p146 = scmp.eq.s32.totalorder %s17, 0
      %p147 = por %p145, %p146
      %p148 = scmp.ne.s32.totalorder %s137, %s140
      %p149 = scmp.eq.s32.totalorder %s22, 1
      %p150 = por %p148, %p149
      %p151 = scmp.ne.s32.totalorder %s140, %s141
      %p152 = scmp.eq.s32.totalorder %s22, 0
      %p153 = por %p151, %p152
      %p154 = scmp.ne.s32.totalorder %s140, %s141
      %p155 = scmp.eq.s32.totalorder %s23, 1
      %p156 = por %p154, %p155
      %p158 = scmp.ne.s32.totalorder %s141, %s157
      %p159 = scmp.eq.s32.totalorder %s23, 0
      %p160 = por %p158, %p159
      %p161 = scmp.le.s32.totalorder 1, %s17
      %p162 = scmp.lt.s32.totalorder %s17, 3
      %p163 = pnand %p161, %p162
      %p164 = pneg %p163
      // Predicated region
      $region9: #{tpu_custom_call.1} parent=5 // pred_check
        _
      $region10: #{tpu_custom_call.1} parent=5 // pred_check_branch
        %166 = sbr.rel (%p163) target = $region12
      $region11: #{tpu_custom_call.1} parent=5 // pred_region
        %s167 = ssub.s32 %s17, 1
        // Predicated region
        $region13: #{tpu_custom_call.1} parent=11 // pred_check
          %p168 = pneg %p64
        $region14: #{tpu_custom_call.1} parent=11 // pred_check_branch
          %170 = sbr.rel (%p168) target = $region16
        $region15: #{tpu_custom_call.1} parent=11 // pred_region
          _
        $region16: #{tpu_custom_call.1} parent=11 // pred_fallthru
          _
        // Predicated region
        $region17: #{tpu_custom_call.1} parent=11 // pred_check
          %p171 = pneg %p85
        $region18: #{tpu_custom_call.1} parent=11 // pred_check_branch
          %173 = sbr.rel (%p171) target = $region20
        $region19: #{tpu_custom_call.1} parent=11 // pred_region
          _
        $region20: #{tpu_custom_call.1} parent=11 // pred_fallthru
          _
        // Predicated region
        $region21: #{tpu_custom_call.1} parent=11 // pred_check
          %p174 = pneg %p106
        $region22: #{tpu_custom_call.1} parent=11 // pred_check_branch
          %176 = sbr.rel (%p174) target = $region24
        $region23: #{tpu_custom_call.1} parent=11 // pred_region
          _
        $region24: #{tpu_custom_call.1} parent=11 // pred_fallthru
          _
        // Predicated region
        $region25: #{tpu_custom_call.1} parent=11 // pred_check
          %p177 = pneg %p127
        $region26: #{tpu_custom_call.1} parent=11 // pred_check_branch
          %179 = sbr.rel (%p177) target = $region28
        $region27: #{tpu_custom_call.1} parent=11 // pred_region
          _
        $region28: #{tpu_custom_call.1} parent=11 // pred_fallthru
          _
      $region12: #{tpu_custom_call.1} parent=5 // pred_fallthru
        _
      %p180 = scmp.lt.s32.totalorder %s17, 2
      // Predicated region
      $region29: #{tpu_custom_call.1} parent=5 // pred_check
        %p181 = pneg %p180
      $region30: #{tpu_custom_call.1} parent=5 // pred_check_branch
        %183 = sbr.rel (%p181) target = $region32
      $region31: #{tpu_custom_call.1} parent=5 // pred_region
        // Predicated region
        $region33: #{tpu_custom_call.1} parent=31 // pred_check
          %p184 = pneg %p37
        $region34: #{tpu_custom_call.1} parent=31 // pred_check_branch
          %186 = sbr.rel (%p184) target = $region36
        $region35: #{tpu_custom_call.1} parent=31 // pred_region
          %s187 = sand.u32 %s27, 1
          %s188 = scalar_lea.sflag [#allocation3], %s187
          %s189 = sand.u32 %s27, 1
          %s190 = smul.addr %s189, 16
          %s191 = scalar_lea.vmem [#allocation2], %s190
          %s193 = ssub.s32 256, 256
          %194 = vsyncadd %s188, %s193
          %s195 = smul.addr %s17, 2
          %s196 = smul.addr %s195, 128
          %s197 = scalar_lea.hbm %s0, %s196
          %s199 = sshll.u32 %s191, 4
          %s200 = int_to_ptr.vmem [resolvable:$true] %s199
          %202 = dma.hbm_to_vmem [thread:$0]  %s197, 256, %s200, %s188
        $region36: #{tpu_custom_call.1} parent=31 // pred_fallthru
          _
      $region32: #{tpu_custom_call.1} parent=5 // pred_fallthru
        _
      %p203 = scmp.le.s32.totalorder 1, %s17
      %p204 = scmp.lt.s32.totalorder %s17, 3
      %p205 = pnand %p203, %p204
      %p206 = pneg %p205
      // Predicated region
      $region37: #{tpu_custom_call.1} parent=5 // pred_check
        _
      $region38: #{tpu_custom_call.1} parent=5 // pred_check_branch
        %208 = sbr.rel (%p205) target = $region40
      $region39: #{tpu_custom_call.1} parent=5 // pred_region
        %s209 = ssub.s32 %s17, 1
        %s210 = sand.u32 %s30, 1
        %s211 = scalar_lea.sflag [#allocation3], %s210
        %s212 = sand.u32 %s30, 1
        %s213 = smul.addr %s212, 16
        %s214 = scalar_lea.vmem [#allocation2], %s213
        // Predicated region
        $region41: #{tpu_custom_call.1} parent=39 // pred_check
          %p215 = pneg %p43
        $region42: #{tpu_custom_call.1} parent=39 // pred_check_branch
          %217 = sbr.rel (%p215) target = $region44
        $region43: #{tpu_custom_call.1} parent=39 // pred_region
          %218 = dma.done %s211, 256
        $region44: #{tpu_custom_call.1} parent=39 // pred_fallthru
          _
        %s219 = sand.u32 %s30, 1
        %s220 = scalar_lea.sflag [#allocation3], %s219
        %s221 = sand.u32 %s30, 1
        %s222 = smul.addr %s221, 16
        %s223 = scalar_lea.vmem [#allocation2], %s222
        %p224 = pneg %p43
        %p225 = pneg %p40
        %p226 = pneg %p64
        %p227 = pneg %p61
        %p228 = pneg %p85
        %p229 = pneg %p82
        %p230 = pneg %p106
        %p231 = pneg %p103
        %p232 = pneg %p127
        %p233 = pneg %p124
        %p234 = pneg %p153
        %p235 = pneg %p150
        %s236 = sand.u32 %s140, 1
        %s237 = scalar_lea.sflag [#allocation4], %s236
        %s238 = sand.u32 %s140, 1
        %s239 = smul.addr %s238, 16
        %s240 = scalar_lea.vmem [#allocation5], %s239
        %v241 = vld [vmem:[%s214] sm:$0xff]
        %v242 = vld [vmem:[%s214 + $0x8] sm:$0xff]
        %v243 = vlaneseq
        %v244 = vand.u32 %v243, 127
        %v245 = vadd.s32 %v244, 128
        %vm246 = vcmp.lt.s32.totalorder %v244, 0
        %v247 = vsub.s32 0, %v244
        %v248 = vsel %vm246, %v247, %v244
        %v249 = vshrl.u32 %v248, 4
        %v250 = vand.u32 %v248, 15
        %v251 = vsub.s32 0, %v250
        %v252 = vsel %vm246, %v251, %v250
        %vm253 = vcmp.lt.s32.totalorder %v245, 0
        %v254 = vsub.s32 0, %v245
        %v255 = vsel %vm253, %v254, %v245
        %v256 = vshrl.u32 %v255, 4
        %v257 = vand.u32 %v255, 15
        %v258 = vsub.s32 0, %v257
        %v259 = vsel %vm253, %v258, %v257
        %vm260 = vcmp.ne.s32.totalorder %v252, 0
        %vm261 = vcmp.ne.s32.totalorder %v259, 0
        %vm262 = vcmp.lt.s32.totalorder %v252, 0
        %vm263 = vcmp.lt.s32.totalorder %v259, 0
        %vm264 = vmand %vm262, %vm260
        %vm265 = vmand %vm263, %vm261
        %v266 = vadd.s32 %v252, 16
        %v267 = vadd.s32 %v259, 16
        %v268 = vsel %vm264, %v266, %v252
        %v269 = vsel %vm265, %v267, %v259
        %vm270 = vcmp.eq.s32.totalorder %v268, 0
        %vm271 = vcmp.eq.s32.totalorder %v269, 0
        %vm272 = vcmp.eq.s32.totalorder %v268, 15
        %vm273 = vcmp.eq.s32.totalorder %v269, 15
        %vm274 = vcmp.lt.s32.totalorder %v244, 16
        %vm275 = vcmp.lt.s32.totalorder %v245, 16
        %vm276 = vcmp.ge.s32.totalorder %v244, 240
        %vm277 = vcmp.ge.s32.totalorder %v245, 240
        %278 = vrot.lane.b32.xlu0 %v241, 127
        %v279 = vpop.permute.xlu0 %278
        %280 = vrot.lane.b32.xlu0 %v242, 127
        %v281 = vpop.permute.xlu0 %280
        %vm282 = vcmp.lt.s32.totalorder %v244, 127
        %v283 = vsel %vm282, %v279, %v281
        %v284 = vsel %vm282, %v281, %v279
        %285 = vrot.lane.b32.xlu0 %v241, 1
        %v286 = vpop.permute.xlu0 %285
        %287 = vrot.lane.b32.xlu0 %v242, 1
        %v288 = vpop.permute.xlu0 %287
        %vm289 = vcmp.lt.s32.totalorder %v244, 1
        %v290 = vsel %vm289, %v286, %v288
        %v291 = vsel %vm289, %v288, %v286
        %v292 = vsel %vm270, %v283, %v291
        %v293 = vsel %vm271, %v284, %v290
        %v294 = vsel %vm272, %v291, %v283
        %v295 = vsel %vm273, %v290, %v284
        %296 = vrot.lane.b32.xlu0 %v292, 112
        %v297 = vpop.permute.xlu0 %296
        %298 = vrot.lane.b32.xlu0 %v293, 112
        %v299 = vpop.permute.xlu0 %298
        %vm300 = vcmp.lt.s32.totalorder %v244, 112
        %v301 = vsel %vm300, %v297, %v299
        %v302 = vsel %vm300, %v299, %v297
        %303 = vrot.lane.b32.xlu0 %v292, 16
        %v304 = vpop.permute.xlu0 %303
        %305 = vrot.lane.b32.xlu0 %v293, 16
        %v306 = vpop.permute.xlu0 %305
        %v307 = vsel %vm274, %v304, %v306
        %v308 = vsel %vm274, %v306, %v304
        %v309 = vsel %vm274, %v301, %v308
        %v310 = vsel %vm275, %v302, %v307
        %v311 = vsel %vm276, %v308, %v301
        %v312 = vsel %vm277, %v307, %v302
        %313 = vrot.lane.b32.xlu0 %v241, 112
        %v314 = vpop.permute.xlu0 %313
        %315 = vrot.lane.b32.xlu0 %v242, 112
        %v316 = vpop.permute.xlu0 %315
        %v317 = vsel %vm300, %v314, %v316
        %v318 = vsel %vm300, %v316, %v314
        %319 = vrot.lane.b32.xlu0 %v241, 16
        %v320 = vpop.permute.xlu0 %319
        %321 = vrot.lane.b32.xlu0 %v242, 16
        %v322 = vpop.permute.xlu0 %321
        %v323 = vsel %vm274, %v320, %v322
        %v324 = vsel %vm274, %v322, %v320
        %v325 = vsel %vm274, %v317, %v324
        %v326 = vsel %vm275, %v318, %v323
        %v327 = vsel %vm276, %v324, %v317
        %v328 = vsel %vm277, %v323, %v318
        %329 = vrot.lane.b32.xlu0 %v294, 112
        %v330 = vpop.permute.xlu0 %329
        %331 = vrot.lane.b32.xlu0 %v295, 112
        %v332 = vpop.permute.xlu0 %331
        %v333 = vsel %vm300, %v330, %v332
        %v334 = vsel %vm300, %v332, %v330
        %335 = vrot.lane.b32.xlu0 %v294, 16
        %v336 = vpop.permute.xlu0 %335
        %337 = vrot.lane.b32.xlu0 %v295, 16
        %v338 = vpop.permute.xlu0 %337
        %v339 = vsel %vm274, %v336, %v338
        %v340 = vsel %vm274, %v338, %v336
        %v341 = vsel %vm274, %v333, %v340
        %v342 = vsel %vm275, %v334, %v339
        %v343 = vsel %vm276, %v340, %v333
        %v344 = vsel %vm277, %v339, %v334
        %v345 = vld [vmem:[%s1] sm:$0xff]
        %v346 = vld [vmem:[%s2] sm:$0xff]
        %348 = vset.pattern.permute.xlu0 0
        %349 = vperm.xlu0 %348, %v346
        %v350 = vpop.permute.xlu0 %349
        %vm352 = vcmask 588800
        %v354 = vsel %vm352, %v345, 0
        %356 = vmatprep.subr.mxu0 %v310
        %357 = vmatpush1.msra.mxu0 %v309
        %358 = vmatprep.subr.mxu0 %v326
        %359 = vmatpush1.msra.mxu0 %v325
        %360 = vmatprep.subr.mxu0 %v342
        %361 = vmatpush1.msra.mxu0 %v341
        %362 = vmatprep.subr.mxu0 %v293
        %363 = vmatpush1.msra.mxu0 %v292
        %364 = vmatprep.subr.mxu0 %v242
        %365 = vmatpush1.msra.mxu0 %v241
        %366 = vmatprep.subr.mxu0 %v295
        %367 = vmatpush1.msra.mxu0 %v294
        %368 = vmatprep.subr.mxu0 %v312
        %369 = vmatpush1.msra.mxu0 %v311
        %370 = vmatprep.subr.mxu0 %v328
        %371 = vmatpush1.msra.mxu0 %v327
        %372 = vmatprep.subr.mxu0 %v344
        %373 = vmatpush1.msra.mxu0 %v343
        %374 = vmatprep.subr.mxu0 0.0
        %375 = vmatpush1.msra.mxu0 0.0
        %376 = vmatprep.subr.mxu0 0.0
        %377 = vmatpush1.msra.mxu0 0.0
        %378 = vmatprep.subr.mxu0 0.0
        %379 = vmatpush1.msra.mxu0 0.0
        %380 = vmatprep.subr.mxu0 0.0
        %381 = vmatpush1.msra.mxu0 0.0
        %382 = vmatprep.subr.mxu0 0.0
        %383 = vmatpush1.msra.mxu0 0.0
        %384 = vmatprep.subr.mxu0 0.0
        %385 = vmatpush1.msra.mxu0 0.0
        %386 = vmatprep.subr.mxu0 0.0
        %387 = vmatpush1.msra.mxu0 0.0
        %388 = vmatprep.subr.mxu0 0.0
        %389 = vmatpush1.msra.mxu0 0.0
        %390 = vmatprep.subr.mxu0 0.0
        %391 = vmatpush1.msra.mxu0 0.0
        %392 = vmatprep.subr.mxu0 0.0
        %393 = vmatpush1.msra.mxu0 0.0
        %394 = vmatprep.subr.mxu0 0.0
        %395 = vmatpush1.msra.mxu0 0.0
        %396 = vmatprep.subr.mxu0 0.0
        %397 = vmatpush1.msra.mxu0 0.0
        %398 = vmatprep.subr.mxu0 0.0
        %399 = vmatpush1.msra.mxu0 0.0
        %400 = vmatprep.subr.mxu0 0.0
        %401 = vmatpush1.msra.mxu0 0.0
        %402 = vmatprep.subr.mxu0 0.0
        %403 = vmatpush1.msra.mxu0 0.0
        %404 = vmatprep.subr.mxu0 0.0
        %405 = vmatpush1.msra.mxu0 0.0
        %406 = vmatprep.subr.mxu0 0.0
        %407 = vmatpush1.msra.mxu0 0.0
        %408 = vmatprep.subr.mxu0 0.0
        %409 = vmatpush1.msra.mxu0 0.0
        %410 = vmatprep.subr.mxu0 0.0
        %411 = vmatpush1.msra.mxu0 0.0
        %412 = vmatprep.subr.mxu0 0.0
        %413 = vmatpush1.msra.mxu0 0.0
        %414 = vmatprep.subr.mxu0 0.0
        %415 = vmatpush1.msra.mxu0 0.0
        %416 = vmatprep.subr.mxu0 0.0
        %417 = vmatpush1.msra.mxu0 0.0
        %418 = vmatprep.subr.mxu0 0.0
        %419 = vmatpush1.msra.mxu0 0.0
        %420 = vmatprep.mubr.f32.mxu0 0.0
        %421 = vmatmul.mubr.f32.gmra.mrb[0].mxu0 %v354
        %v422 = vpop.f32.mrb[0].mxu0
        %v423 = vadd.f32 %v350, %v422
        %v424 = vpop.f32.mrb[0].mxu0
        %v425 = vadd.f32 %v350, %v424
        %426 = vdwg.mxu0
        %v427 = vadd.f32 %v423, %v425
        %428 = vadd.xlane.f32.xlu0 %v427
        %v429 = vpop.xlane.xlu0 %428
        %v430 = vmul.f32 %v423, %v423
        %v431 = vmul.f32 %v425, %v425
        %v432 = vadd.f32 %v430, %v431
        %433 = vadd.xlane.f32.xlu0 %v432
        %v434 = vpop.xlane.xlu0 %433
        %v435 = vmul.f32 %v429, 0.00390625
        %v436 = vmul.f32 %v434, 0.00390625
        %v437 = vmul.f32 %v435, %v435
        %v438 = vsub.f32 %v436, %v437
        %v439 = vsub.f32 %v423, %v435
        %v440 = vsub.f32 %v425, %v435
        %v441 = vadd.f32 %v438, 1e-05
        %v442 = vrsqrt.pop %v441
        %v443 = vmul.f32 %v439, %v442
        %v444 = vmul.f32 %v440, %v442
        %v445 = vmax.f32 %v443, 0.0
        %v446 = vmax.f32 %v444, 0.0
        %447 = vrot.lane.b32.xlu0 %v445, 127
        %v448 = vpop.permute.xlu0 %447
        %449 = vrot.lane.b32.xlu0 %v446, 127
        %v450 = vpop.permute.xlu0 %449
        %v451 = vsel %vm282, %v448, %v450
        %v452 = vsel %vm282, %v450, %v448
        %453 = vrot.lane.b32.xlu0 %v445, 1
        %v454 = vpop.permute.xlu0 %453
        %455 = vrot.lane.b32.xlu0 %v446, 1
        %v456 = vpop.permute.xlu0 %455
        %v457 = vsel %vm289, %v454, %v456
        %v458 = vsel %vm289, %v456, %v454
        %v459 = vsel %vm270, %v451, %v458
        %v460 = vsel %vm271, %v452, %v457
        %v461 = vsel %vm272, %v458, %v451
        %v462 = vsel %vm273, %v457, %v452
        %463 = vrot.lane.b32.xlu0 %v459, 112
        %v464 = vpop.permute.xlu0 %463
        %465 = vrot.lane.b32.xlu0 %v460, 112
        %v466 = vpop.permute.xlu0 %465
        %v467 = vsel %vm300, %v464, %v466
        %v468 = vsel %vm300, %v466, %v464
        %469 = vrot.lane.b32.xlu0 %v459, 16
        %v470 = vpop.permute.xlu0 %469
        %471 = vrot.lane.b32.xlu0 %v460, 16
        %v472 = vpop.permute.xlu0 %471
        %v473 = vsel %vm274, %v470, %v472
        %v474 = vsel %vm274, %v472, %v470
        %v475 = vsel %vm274, %v467, %v474
        %v476 = vsel %vm275, %v468, %v473
        %v477 = vsel %vm276, %v474, %v467
        %v478 = vsel %vm277, %v473, %v468
        %479 = vrot.lane.b32.xlu0 %v445, 112
        %v480 = vpop.permute.xlu0 %479
        %481 = vrot.lane.b32.xlu0 %v446, 112
        %v482 = vpop.permute.xlu0 %481
        %v483 = vsel %vm300, %v480, %v482
        %v484 = vsel %vm300, %v482, %v480
        %485 = vrot.lane.b32.xlu0 %v445, 16
        %v486 = vpop.permute.xlu0 %485
        %487 = vrot.lane.b32.xlu0 %v446, 16
        %v488 = vpop.permute.xlu0 %487
        %v489 = vsel %vm274, %v486, %v488
        %v490 = vsel %vm274, %v488, %v486
        %v491 = vsel %vm274, %v483, %v490
        %v492 = vsel %vm275, %v484, %v489
        %v493 = vsel %vm276, %v490, %v483
        %v494 = vsel %vm277, %v489, %v484
        %495 = vrot.lane.b32.xlu0 %v461, 112
        %v496 = vpop.permute.xlu0 %495
        %497 = vrot.lane.b32.xlu0 %v462, 112
        %v498 = vpop.permute.xlu0 %497
        %v499 = vsel %vm300, %v496, %v498
        %v500 = vsel %vm300, %v498, %v496
        %501 = vrot.lane.b32.xlu0 %v461, 16
        %v502 = vpop.permute.xlu0 %501
        %503 = vrot.lane.b32.xlu0 %v462, 16
        %v504 = vpop.permute.xlu0 %503
        %v505 = vsel %vm274, %v502, %v504
        %v506 = vsel %vm274, %v504, %v502
        %v507 = vsel %vm274, %v499, %v506
        %v508 = vsel %vm275, %v500, %v505
        %v509 = vsel %vm276, %v506, %v499
        %v510 = vsel %vm277, %v505, %v500
        %v511 = vld [vmem:[%s3] sm:$0xff]
        %v512 = vld [vmem:[%s4] sm:$0xff]
        %514 = vset.pattern.permute.xlu0 0
        %515 = vperm.xlu0 %514, %v512
        %v516 = vpop.permute.xlu0 %515
        %v519 = vsel %vm352, %v511, 0
        %521 = vmatprep.subr.mxu0 %v476
        %522 = vmatpush1.msra.mxu0 %v475
        %523 = vmatprep.subr.mxu0 %v492
        %524 = vmatpush1.msra.mxu0 %v491
        %525 = vmatprep.subr.mxu0 %v508
        %526 = vmatpush1.msra.mxu0 %v507
        %527 = vmatprep.subr.mxu0 %v460
        %528 = vmatpush1.msra.mxu0 %v459
        %529 = vmatprep.subr.mxu0 %v446
        %530 = vmatpush1.msra.mxu0 %v445
        %531 = vmatprep.subr.mxu0 %v462
        %532 = vmatpush1.msra.mxu0 %v461
        %533 = vmatprep.subr.mxu0 %v478
        %534 = vmatpush1.msra.mxu0 %v477
        %535 = vmatprep.subr.mxu0 %v494
        %536 = vmatpush1.msra.mxu0 %v493
        %537 = vmatprep.subr.mxu0 %v510
        %538 = vmatpush1.msra.mxu0 %v509
        %539 = vmatprep.subr.mxu0 0.0
        %540 = vmatpush1.msra.mxu0 0.0
        %541 = vmatprep.subr.mxu0 0.0
        %542 = vmatpush1.msra.mxu0 0.0
        %543 = vmatprep.subr.mxu0 0.0
        %544 = vmatpush1.msra.mxu0 0.0
        %545 = vmatprep.subr.mxu0 0.0
        %546 = vmatpush1.msra.mxu0 0.0
        %547 = vmatprep.subr.mxu0 0.0
        %548 = vmatpush1.msra.mxu0 0.0
        %549 = vmatprep.subr.mxu0 0.0
        %550 = vmatpush1.msra.mxu0 0.0
        %551 = vmatprep.subr.mxu0 0.0
        %552 = vmatpush1.msra.mxu0 0.0
        %553 = vmatprep.subr.mxu0 0.0
        %554 = vmatpush1.msra.mxu0 0.0
        %555 = vmatprep.subr.mxu0 0.0
        %556 = vmatpush1.msra.mxu0 0.0
        %557 = vmatprep.subr.mxu0 0.0
        %558 = vmatpush1.msra.mxu0 0.0
        %559 = vmatprep.subr.mxu0 0.0
        %560 = vmatpush1.msra.mxu0 0.0
        %561 = vmatprep.subr.mxu0 0.0
        %562 = vmatpush1.msra.mxu0 0.0
        %563 = vmatprep.subr.mxu0 0.0
        %564 = vmatpush1.msra.mxu0 0.0
        %565 = vmatprep.subr.mxu0 0.0
        %566 = vmatpush1.msra.mxu0 0.0
        %567 = vmatprep.subr.mxu0 0.0
        %568 = vmatpush1.msra.mxu0 0.0
        %569 = vmatprep.subr.mxu0 0.0
        %570 = vmatpush1.msra.mxu0 0.0
        %571 = vmatprep.subr.mxu0 0.0
        %572 = vmatpush1.msra.mxu0 0.0
        %573 = vmatprep.subr.mxu0 0.0
        %574 = vmatpush1.msra.mxu0 0.0
        %575 = vmatprep.subr.mxu0 0.0
        %576 = vmatpush1.msra.mxu0 0.0
        %577 = vmatprep.subr.mxu0 0.0
        %578 = vmatpush1.msra.mxu0 0.0
        %579 = vmatprep.subr.mxu0 0.0
        %580 = vmatpush1.msra.mxu0 0.0
        %581 = vmatprep.subr.mxu0 0.0
        %582 = vmatpush1.msra.mxu0 0.0
        %583 = vmatprep.subr.mxu0 0.0
        %584 = vmatpush1.msra.mxu0 0.0
        %585 = vmatprep.mubr.f32.mxu0 0.0
        %586 = vmatmul.mubr.f32.gmra.mrb[0].mxu0 %v519
        %v587 = vpop.f32.mrb[0].mxu0
        %v588 = vadd.f32 %v516, %v587
        %v589 = vpop.f32.mrb[0].mxu0
        %v590 = vadd.f32 %v516, %v589
        %591 = vdwg.mxu0
        %v592 = vadd.f32 %v588, %v590
        %593 = vadd.xlane.f32.xlu0 %v592
        %v594 = vpop.xlane.xlu0 %593
        %v595 = vmul.f32 %v588, %v588
        %v596 = vmul.f32 %v590, %v590
        %v597 = vadd.f32 %v595, %v596
        %598 = vadd.xlane.f32.xlu0 %v597
        %v599 = vpop.xlane.xlu0 %598
        %v600 = vmul.f32 %v594, 0.00390625
        %v601 = vmul.f32 %v599, 0.00390625
        %v602 = vmul.f32 %v600, %v600
        %v603 = vsub.f32 %v601, %v602
        %v604 = vsub.f32 %v588, %v600
        %v605 = vsub.f32 %v590, %v600
        %v606 = vadd.f32 %v603, 1e-05
        %v607 = vrsqrt.pop %v606
        %v608 = vmul.f32 %v604, %v607
        %v609 = vmul.f32 %v605, %v607
        %v610 = vadd.f32 %v241, %v608
        %v611 = vadd.f32 %v242, %v609
        %612 = vst [vmem:[%s240] sm:$0xff] %v610
        %613 = vst [vmem:[%s240 + $0x8] sm:$0xff] %v611
        %s614 = sand.u32 %s140, 1
        %s615 = scalar_lea.sflag [#allocation4], %s614
        %s616 = sand.u32 %s140, 1
        %s617 = smul.addr %s616, 16
        %s618 = scalar_lea.vmem [#allocation5], %s617
        // Predicated region
        $region45: #{tpu_custom_call.1} parent=39 // pred_check
          %p619 = pneg %p150
        $region46: #{tpu_custom_call.1} parent=39 // pred_check_branch
          %621 = sbr.rel (%p619) target = $region48
        $region47: #{tpu_custom_call.1} parent=39 // pred_region
          %s623 = ssub.s32 256, 256
          %624 = vsyncadd %s615, %s623
          %s625 = smul.addr %s22, 2
          %s626 = smul.addr %s625, 128
          %s627 = scalar_lea.hbm %s5, %s626
          %s629 = sshll.u32 %s618, 4
          %s630 = int_to_ptr.vmem [resolvable:$true] %s629
          %632 = dma.vmem_to_hbm [thread:$0]  %s630, 256, %s627, %s615
        $region48: #{tpu_custom_call.1} parent=39 // pred_fallthru
          _
      $region40: #{tpu_custom_call.1} parent=5 // pred_fallthru
        _
      %p633 = scmp.le.s32.totalorder 2, %s17
      // Predicated region
      $region49: #{tpu_custom_call.1} parent=5 // pred_check
        %p634 = pneg %p633
      $region50: #{tpu_custom_call.1} parent=5 // pred_check_branch
        %636 = sbr.rel (%p634) target = $region52
      $region51: #{tpu_custom_call.1} parent=5 // pred_region
        %s637 = ssub.s32 %s17, 2
        // Predicated region
        $region53: #{tpu_custom_call.1} parent=51 // pred_check
          %p638 = pneg %p156
        $region54: #{tpu_custom_call.1} parent=51 // pred_check_branch
          %640 = sbr.rel (%p638) target = $region56
        $region55: #{tpu_custom_call.1} parent=51 // pred_region
          %s641 = sand.u32 %s141, 1
          %s642 = scalar_lea.sflag [#allocation4], %s641
          %s643 = sand.u32 %s141, 1
          %s644 = smul.addr %s643, 16
          %s645 = scalar_lea.vmem [#allocation5], %s644
          %646 = dma.done %s642, 256
        $region56: #{tpu_custom_call.1} parent=51 // pred_fallthru
          _
      $region52: #{tpu_custom_call.1} parent=5 // pred_fallthru
        _
    $region6: #{tpu_custom_call.1} parent=1 // loop_footer
      %s21 = sadd.s32 1, %s17
    $region7: #{tpu_custom_call.1} parent=1 // loop_footer_branch
      %16 = sbr.rel target = $region3
    $region8: #{tpu_custom_call.1} parent=1 // loop_exit
      _
    %647 = vsyncpa [#allocation3], 1
    %s648 = scalar_lea.sflag [#allocation3], 1
    %649 = vsyncpa %s648, 1
    %650 = vsyncpa [#allocation4], 1
    %s651 = scalar_lea.sflag [#allocation4], 1
    %652 = vsyncpa %s651, 1

</llo_original>
